<compile_context>
chip_gen: v6e
topology: v6e:2x2x1
jax: 0.10.0
libtpu: 0.0.40
codegen_flags: <defaults>
</compile_context>

<pallas_src>
import jax
import jax.numpy as jnp
from jax.experimental import pallas as pl
from jax.experimental.pallas import tpu as pltpu


def _conv_prelu_kernel(xcol_ref, w_ref, b_ref, alpha_ref, out_ref):
    # xcol_ref : (1, TH, TW, 9*Cin) bf16   full 3x3 im2col tile
    # w_ref    : (9*Cin, Cout)      bf16   (ky,kx,cin)-major taps (resident)
    # b_ref    : (1, Cout)          f32
    # alpha_ref: (1,)               f32    SMEM (PReLU shared slope)
    # out_ref  : (1, TH, TW, Cout)  bf16   conv + bias + PReLU (pre-shuffle)
    x = xcol_ref[0]                                            # (TH, TW, 9*Cin)
    acc = jax.lax.dot_general(                                 # single deep MXU pass
        x, w_ref[...],
        dimension_numbers=(((2,), (0,)), ((), ())),
        preferred_element_type=jnp.float32)                    # (TH, TW, Cout) f32
    acc = acc + b_ref[0][None, None, :]
    alpha = alpha_ref[0]
    acc = jnp.where(acc >= 0.0, acc, alpha * acc)              # PReLU (VPU)
    out_ref[0] = acc.astype(out_ref.dtype)                     # single bf16 store


def _vmem_budget_bytes():
    """Generation-aware scoped-VMEM budget: ~3/4 of per-core VMEM, capped at
    96 MiB (v5e/v6e: 128 MiB physical; v7x: 64 MiB per TensorCore)."""
    cap = 64 << 20                      # conservative fallback (v7x per-core)
    try:
        cap = int(pltpu.get_tpu_info().vmem_capacity_bytes)
    except Exception:
        pass
    return min(cap * 3 // 4, 96 << 20)


def _pick_tiles(N, H, W, Cin, Cout, vmem_budget):
    """Choose (TH, TW).

    Accounts for the double-buffered bf16 input block (TH*TW*9*Cin), the
    double-buffered bf16 output block (TH*TW*Cout) and the resident weight /
    bias blocks.  Prefers full-width tiles (dense stores) and enough grid
    steps for pipeline depth + v7x megacore balance.
    """
    fixed = 2 * (9 * Cin * Cout * 2 + Cout * 4)            # weights + bias, x2 bufs
    per_px = 2 * (9 * Cin * 2 + Cout * 2)                  # in + out blocks, bf16, x2 bufs
    tile_budget = max(vmem_budget - fixed, 1 << 20)

    # Column tile: full width unless a single full-width row already busts budget.
    tw = W
    if W * per_px > tile_budget:
        cands = [d for d in range(8, W) if W % d == 0 and d % 8 == 0
                 and d * per_px <= tile_budget]
        if cands:
            tw = max(cands)
    n_w = W // tw

    max_th = max(tile_budget // (tw * per_px), 1)

    # >= ~8 grid steps total, and >= 4 row tiles when N == 1 (two v7x cores).
    want_rows = max(4 if N == 1 else 2, (8 + N * n_w - 1) // (N * n_w))
    want_rows = min(want_rows, H)

    divs = [d for d in range(H, 0, -1) if H % d == 0]
    fitting = [d for d in divs if d <= max_th] or [1]
    th = fitting[0]                     # largest tile that fits the budget
    for d in fitting:                   # prefer enough row tiles for parallelism
        if H // d >= want_rows:
            th = d
            break
    return th, tw


def upsample_block(x_nchw, w_oihw, bias, prelu_alpha, *, row_tile=None, col_tile=None):
    """Forward of UpsampleBlock.

    x_nchw      : (N, Cin, H, W)     with Cin = channels // 4
    w_oihw      : (Cout, Cin, 3, 3)  with Cout = channels
    bias        : (Cout,)
    prelu_alpha : (1,)               (nn.PReLU() single shared slope)
    returns     : (N, Cin, 2H, 2W)   float32 NCHW (matches PyTorch)
    """
    N, Cin, H, W = x_nchw.shape
    Cout = w_oihw.shape[0]
    assert Cout == 4 * Cin

    # ---- XLA-side prep: NCHW->NHWC, pad, full 3x3 im2col, bf16 cast --------
    # xcol[n, h, w, (ky*3+kx)*Cin + cin] = pad(x)[n, h+ky, w+kx, cin]
    x_nhwc = jnp.transpose(x_nchw, (0, 2, 3, 1))
    x_pad = jnp.pad(x_nhwc, ((0, 0), (1, 1), (1, 1), (0, 0)))
    x_col = jnp.concatenate(
        [x_pad[:, ky:ky + H, kx:kx + W, :] for ky in range(3) for kx in range(3)],
        axis=-1).astype(jnp.bfloat16)                          # (N, H, W, 9*Cin)

    # (Cout, Cin, ky, kx) -> ((ky, kx, cin), Cout) matching the im2col order.
    w_mat = jnp.transpose(w_oihw, (2, 3, 1, 0)).reshape(9 * Cin, Cout)
    w_mat = w_mat.astype(jnp.bfloat16)
    b2 = bias.reshape(1, Cout).astype(jnp.float32)
    alpha = prelu_alpha.reshape(1).astype(jnp.float32)

    budget = _vmem_budget_bytes()
    th, tw = _pick_tiles(N, H, W, Cin, Cout, budget)
    if row_tile is not None:
        th = row_tile
    if col_tile is not None:
        tw = col_tile
    assert H % th == 0 and W % tw == 0

    conv_out = pl.pallas_call(
        _conv_prelu_kernel,
        out_shape=jax.ShapeDtypeStruct((N, H, W, Cout), jnp.bfloat16),
        grid_spec=pltpu.PrefetchScalarGridSpec(
            num_scalar_prefetch=0,
            grid=(N, H // th, W // tw),
            in_specs=[
                # streamed per-tile input block (last dim full -> layout-legal)
                pl.BlockSpec((1, th, tw, 9 * Cin), lambda n, h, w: (n, h, w, 0)),
                # resident weights / bias
                pl.BlockSpec((9 * Cin, Cout), lambda n, h, w: (0, 0)),
                pl.BlockSpec((1, Cout), lambda n, h, w: (0, 0)),
                pl.BlockSpec(memory_space=pltpu.SMEM),
            ],
            out_specs=pl.BlockSpec((1, th, tw, Cout), lambda n, h, w: (n, h, w, 0)),
        ),
        compiler_params=pltpu.CompilerParams(
            dimension_semantics=("parallel", "parallel", "parallel"),
            vmem_limit_bytes=int(budget)),
    )(x_col, w_mat, b2, alpha)

    # ---- PixelShuffle(2) + NHWC -> NCHW (fused by XLA into one pass) -------
    # PyTorch: out[n, c, 2h+i, 2w+j] = conv[n, c*4 + i*2 + j, h, w]
    r = 2
    C = Cout // (r * r)
    ps = conv_out.reshape(N, H, W, C, r, r)                # (N,H,W,c,i,j)
    ps = jnp.transpose(ps, (0, 1, 4, 2, 5, 3))             # (N,H,i,W,j,c)
    ps = ps.reshape(N, H * r, W * r, C)
    return jnp.transpose(ps, (0, 3, 1, 2)).astype(jnp.float32)   # NCHW f32


def _reference(x_nchw, w_oihw, bias, prelu_alpha):
    """Pure-JAX f32 reference for validation."""
    y = jax.lax.conv_general_dilated(
        x_nchw.astype(jnp.float32), w_oihw.astype(jnp.float32),
        window_strides=(1, 1), padding=((1, 1), (1, 1)),
        dimension_numbers=("NCHW", "OIHW", "NCHW"))
    y = y + bias.reshape(1, -1, 1, 1)
    N, Cout, H, W = y.shape
    r = 2
    C = Cout // (r * r)
    y = y.reshape(N, C, r, r, H, W)
    y = jnp.transpose(y, (0, 1, 4, 2, 5, 3)).reshape(N, C, H * r, W * r)
    a = prelu_alpha.reshape(())
    return jnp.where(y >= 0.0, y, a * y)


if __name__ == "__main__":
    key = jax.random.PRNGKey(0)
    k_x, k_w, k_b, k_x2, k_w2, k_b2 = jax.random.split(key, 6)
    alpha = jnp.array([0.25], dtype=jnp.float32)   # nn.PReLU() default init

    # --- small config: channels=16 => Conv2d(4, 16, 3, p=1) + PixelShuffle(2)
    channels = 16
    N, Cin, H, W = 2, channels // 4, 16, 16
    x = jax.random.normal(k_x, (N, Cin, H, W), dtype=jnp.float32)
    w = jax.random.normal(k_w, (channels, Cin, 3, 3), dtype=jnp.float32) * 0.1
    b = jax.random.normal(k_b, (channels,), dtype=jnp.float32) * 0.1

    out = jax.block_until_ready(upsample_block(x, w, b, alpha))
    ref = jax.block_until_ready(_reference(x, w, b, alpha))
    assert out.shape == (N, Cin, 2 * H, 2 * W), out.shape
    # bf16 matmul operands + bf16 kernel output (f32 accumulation) -> loosened tol
    err = float(jnp.max(jnp.abs(out - ref)))
    assert jnp.allclose(out, ref, atol=5e-2, rtol=5e-2), err

    # --- lane-dense config: channels=256 (Cin=64, K=9*64=576), still small HxW
    channels2 = 256
    N2, Cin2, H2, W2 = 1, channels2 // 4, 32, 32
    x2 = jax.random.normal(k_x2, (N2, Cin2, H2, W2), dtype=jnp.float32)
    w2 = jax.random.normal(k_w2, (channels2, Cin2, 3, 3), dtype=jnp.float32) * 0.05
    b2 = jax.random.normal(k_b2, (channels2,), dtype=jnp.float32) * 0.1

    out2 = jax.block_until_ready(upsample_block(x2, w2, b2, alpha))
    ref2 = jax.block_until_ready(_reference(x2, w2, b2, alpha))
    assert out2.shape == (N2, Cin2, 2 * H2, 2 * W2), out2.shape
    err2 = float(jnp.max(jnp.abs(out2 - ref2)))
    assert jnp.allclose(out2, ref2, atol=1e-1, rtol=1e-1), err2

    print("KERNEL_OK")
</pallas_src>

<mosaic_0001>
module attributes {stable_mosaic.version = 11 : i64} {
  func.func @_conv_prelu_kernel(%arg0: i32, %arg1: i32, %arg2: i32, %arg3: memref<1x4x16x36xbf16, #tpu.memory_space<vmem>>, %arg4: memref<36x16xbf16, #tpu.memory_space<vmem>>, %arg5: memref<1x16xf32, #tpu.memory_space<vmem>>, %arg6: memref<1xf32, #tpu.memory_space<smem>>, %arg7: memref<1x4x16x16xbf16, #tpu.memory_space<vmem>>) attributes {dimension_semantics = [#tpu.dimension_semantics<parallel>, #tpu.dimension_semantics<parallel>, #tpu.dimension_semantics<parallel>], iteration_bounds = array<i64: 2, 4, 1>, scalar_prefetch = 0 : i64, scratch_operands = 0 : i64, tpu.core_type = #tpu.core_type<tc>, window_params = [{transform_indices = @transform_0, window_bounds = array<i64: 1, 4, 16, 36>}, {pipeline_mode = #tpu.pipeline_mode<synchronous>, transform_indices = @transform_1, window_bounds = array<i64: 36, 16>}, {pipeline_mode = #tpu.pipeline_mode<synchronous>, transform_indices = @transform_2, window_bounds = array<i64: 1, 16>}, {transform_indices = @transform_3, window_bounds = array<i64: 1>}, {transform_indices = @transform_4, window_bounds = array<i64: 1, 4, 16, 16>}]} {
    %c0 = arith.constant 0 : index
    %c0_0 = arith.constant 0 : index
    %c0_1 = arith.constant 0 : index
    %c0_2 = arith.constant 0 : index
    %0 = vector.load %arg3[%c0, %c0_0, %c0_1, %c0_2] : memref<1x4x16x36xbf16, #tpu.memory_space<vmem>>, vector<1x4x16x36xbf16>
    %1 = vector.shape_cast %0 : vector<1x4x16x36xbf16> to vector<4x16x36xbf16>
    %c0_3 = arith.constant 0 : index
    %c0_4 = arith.constant 0 : index
    %2 = vector.load %arg4[%c0_3, %c0_4] : memref<36x16xbf16, #tpu.memory_space<vmem>>, vector<36x16xbf16>
    %cst = arith.constant dense<0.000000e+00> : vector<4x16x16xf32>
    %3 = tpu.matmul %1, %2, %cst {dimension_numbers = #tpu.dot_dimension_numbers<[2], [0], [0, 1], [1], [0, 0, 0, 1, 1, 1], [], []>} : vector<4x16x36xbf16>, vector<36x16xbf16>, vector<4x16x16xf32> -> vector<4x16x16xf32>
    %c0_5 = arith.constant 0 : index
    %c0_6 = arith.constant 0 : index
    %4 = vector.load %arg5[%c0_5, %c0_6] : memref<1x16xf32, #tpu.memory_space<vmem>>, vector<1x16xf32>
    %5 = vector.shape_cast %4 : vector<1x16xf32> to vector<16xf32>
    %6 = vector.shape_cast %5 : vector<16xf32> to vector<1x1x16xf32>
    %7 = vector.broadcast %6 : vector<1x1x16xf32> to vector<4x16x16xf32>
    %8 = arith.addf %3, %7 : vector<4x16x16xf32>
    %c0_7 = arith.constant 0 : index
    %9 = memref.load %arg6[%c0_7] : memref<1xf32, #tpu.memory_space<smem>>
    %cst_8 = arith.constant 0.000000e+00 : f32
    %10 = vector.broadcast %cst_8 : f32 to vector<4x16x16xf32>
    %11 = arith.cmpf oge, %8, %10 : vector<4x16x16xf32>
    %12 = vector.broadcast %9 : f32 to vector<4x16x16xf32>
    %13 = arith.mulf %12, %8 : vector<4x16x16xf32>
    %14 = arith.select %11, %8, %13 : vector<4x16x16xi1>, vector<4x16x16xf32>
    %15 = arith.truncf %14 : vector<4x16x16xf32> to vector<4x16x16xbf16>
    %c0_9 = arith.constant 0 : index
    %c0_10 = arith.constant 0 : index
    %c0_11 = arith.constant 0 : index
    %c0_12 = arith.constant 0 : index
    %16 = vector.load %arg7[%c0_9, %c0_10, %c0_11, %c0_12] : memref<1x4x16x16xbf16, #tpu.memory_space<vmem>>, vector<1x4x16x16xbf16>
    %17 = vector.shape_cast %16 : vector<1x4x16x16xbf16> to vector<4x16x16xbf16>
    %18 = vector.shape_cast %15 : vector<4x16x16xbf16> to vector<1x4x16x16xbf16>
    tpu.vector_store %arg7[%c0_9, %c0_10, %c0_11, %c0_12], %18 {strides = array<i32>} : memref<1x4x16x16xbf16, #tpu.memory_space<vmem>>, vector<1x4x16x16xbf16>,
    return
  }
  func.func @transform_0(%arg0: i32, %arg1: i32, %arg2: i32) -> (i32, i32, i32, i32) {
    %c0_i32 = arith.constant 0 : i32
    %c0_i32_0 = arith.constant 0 : i32
    return %arg0, %arg1, %arg2, %c0_i32 : i32, i32, i32, i32
  }
  func.func @transform_1(%arg0: i32, %arg1: i32, %arg2: i32) -> (i32, i32) {
    %c0_i32 = arith.constant 0 : i32
    %c0_i32_0 = arith.constant 0 : i32
    %c0_i32_1 = arith.constant 0 : i32
    return %c0_i32, %c0_i32_0 : i32, i32
  }
  func.func @transform_2(%arg0: i32, %arg1: i32, %arg2: i32) -> (i32, i32) {
    %c0_i32 = arith.constant 0 : i32
    %c0_i32_0 = arith.constant 0 : i32
    %c0_i32_1 = arith.constant 0 : i32
    return %c0_i32, %c0_i32_0 : i32, i32
  }
  func.func @transform_3(%arg0: i32, %arg1: i32, %arg2: i32) -> i32 {
    %c0_i32 = arith.constant 0 : i32
    %c0_i32_0 = arith.constant 0 : i32
    return %c0_i32 : i32
  }
  func.func @transform_4(%arg0: i32, %arg1: i32, %arg2: i32) -> (i32, i32, i32, i32) {
    %c0_i32 = arith.constant 0 : i32
    %c0_i32_0 = arith.constant 0 : i32
    return %arg0, %arg1, %arg2, %c0_i32 : i32, i32, i32, i32
  }
}

</mosaic_0001>

<llo_original>
// kernel: tpu_custom_call.1
$region0: #{tpu_custom_call.1}
  #allocation0 [shape = 'u32[]', space=smem, size = 0x4, offset = 0x4, fixed_abs, tag = 'smem constant byte address 0x4 - core index']
  #allocation1 [shape = 'u32[144,128]{1,0:T(1,128)}', space=vmem, size = 0x12000, scoped, tag = 'internal scratch']
  #allocation2 [shape = 'f32[1]{0:T(128)S(6)}', space=smem, size = 0x200, scoped, tag = 'scoped memory for tpu_custom_call.1']
  %s0 = inlined_call_operand.hbm [shape: bf16[2,16,16,36], index: 0, kind: input, shape index: {}]
  %s1 = inlined_call_operand.vmem [shape: bf16[36,16], index: 1, kind: input, shape index: {}]
  %s2 = inlined_call_operand.vmem [shape: f32[1,16], index: 2, kind: input, shape index: {}]
  %s3 = inlined_call_operand.<no memory space> [shape: f32[1], index: 3, kind: input, shape index: {}]
  %s4 = inlined_call_operand.hbm [shape: bf16[2,16,16,16], index: 4, kind: output, shape index: {}]
  %s5 = sld [smem:[#allocation0]]
  $region53: #{tpu_custom_call.1} parent=0
    _
  %s7 = ssub.s32 1, %s5
  %s8 = scalar_select 0, %s7, %s5
  %9 = sst [smem:[#allocation2]] %s3
  $region1: #{tpu_custom_call.1} parent=0
    #allocation3 [shape = 'u8[32768]{0}', space=vmem, size = 0x8000, scoped, tag = 'input window, operand 0']
    #allocation4 [shape = 's32[2]{0}', space=sflag, size = 0x8, scoped, tag = 'scoped memory for tpu_custom_call.1']
    #allocation5 [shape = 's32[2]{0}', space=sflag, size = 0x8, scoped, tag = 'scoped memory for tpu_custom_call.1']
    #allocation6 [shape = 'u8[32768]{0}', space=vmem, size = 0x8000, scoped, tag = 'output window, operand 0']
    %10 = vsyncpa [#allocation4], 0
    %s11 = scalar_lea.sflag [#allocation4], 1
    %12 = vsyncpa %s11, 0
    %13 = vsyncpa [#allocation5], 0
    %s14 = scalar_lea.sflag [#allocation5], 1
    %15 = vsyncpa %s14, 0
    loop: start=0, step=1, limit=10
    $region2: #{tpu_custom_call.1} parent=1 // loop_pre_header
      _
    $region3: #{tpu_custom_call.1} parent=1 // loop_header
      %s17 = sphi 0, %s21
      %p18 = scmp.ge.s32.totalorder %s17, 10
      %s24 = sphi 0, %s43
      %s25 = sphi 0, %s39
      %s26 = sphi 0, %s35
      %s27 = sphi 0, %s24
      %s28 = sphi 0, %s25
      %s29 = sphi 0, %s26
      %s30 = sphi 0, %s27
      %s31 = sphi 0, %s28
      %s32 = sphi 0, %s29
      %s50 = sphi 0, %s52
      %s53 = sphi 0, %s50
      %s54 = sphi 0, %s53
      %s70 = sphi 0, %s54
      %s74 = sphi 0, %s74
      %s76 = sphi 0, %s74
      %s77 = sphi 0, %s76
      %s91 = sphi 0, %s77
      %s95 = sphi 0, %s95
      %s97 = sphi 0, %s95
      %s98 = sphi 0, %s97
      %s112 = sphi 0, %s98
      %s116 = sphi 0, %s116
      %s118 = sphi 0, %s116
      %s119 = sphi 0, %s118
      %s133 = sphi 0, %s119
      %s143 = sphi 0, %s145
      %s146 = sphi 0, %s143
      %s147 = sphi 0, %s146
      %s163 = sphi 0, %s147
    $region4: #{tpu_custom_call.1} parent=1 // loop_header_branch
      %20 = sbr.rel (%p18) target = $region8
    $region5: #{tpu_custom_call.1} parent=1 // loop_body
      %s22 = ssub.s32 %s17, 1
      %s23 = ssub.s32 %s17, 2
      %s33 = sadd.s32 1, %s26
      %p34 = scmp.ge.s32.totalorder %s33, 1
      %s35 = scalar_select %p34, 0, %s33
      %s36 = sadd.s32 1, %s25
      %s37 = scalar_select %p34, %s36, %s25
      %p38 = scmp.ge.s32.totalorder %s37, 4
      %s39 = scalar_select %p38, 0, %s37
      %s40 = sadd.s32 1, %s24
      %s41 = scalar_select %p38, %s40, %s24
      %p42 = scmp.ge.s32.totalorder %s41, 2
      %s43 = scalar_select %p42, 0, %s41
      %s44 = ssub.s32 %s24, %s43
      %s45 = ssub.s32 %s25, %s39
      %s46 = sor.u32 %s44, %s45
      %s47 = ssub.s32 %s26, %s35
      %s48 = sor.u32 %s46, %s47
      %p49 = scmp.eq.s32.totalorder %s48, 0
      %s51 = sadd.s32 %s50, 1
      %s52 = scalar_select %p49, %s50, %s51
      %p55 = pneg %p49
      %p56 = scmp.eq.s32.totalorder %s17, 7
      %p57 = por %p55, %p56
      %p58 = scmp.ne.s32.totalorder %s50, %s53
      %p59 = scmp.eq.s32.totalorder %s17, 0
      %p60 = por %p58, %p59
      %p61 = scmp.ne.s32.totalorder %s50, %s53
      %p62 = scmp.eq.s32.totalorder %s22, 7
      %p63 = por %p61, %p62
      %p64 = scmp.ne.s32.totalorder %s53, %s54
      %p65 = scmp.eq.s32.totalorder %s22, 0
      %p66 = por %p64, %p65
      %p67 = scmp.ne.s32.totalorder %s53, %s54
      %p68 = scmp.eq.s32.totalorder %s23, 7
      %p69 = por %p67, %p68
      %p71 = scmp.ne.s32.totalorder %s54, %s70
      %p72 = scmp.eq.s32.totalorder %s23, 0
      %p73 = por %p71, %p72
      %s75 = sadd.s32 %s74, 1
      %p78 = scmp.eq.s32.totalorder %s17, 7
      %p79 = scmp.ne.s32.totalorder %s74, %s76
      %p80 = scmp.eq.s32.totalorder %s17, 0
      %p81 = por %p79, %p80
      %p82 = scmp.ne.s32.totalorder %s74, %s76
      %p83 = scmp.eq.s32.totalorder %s22, 7
      %p84 = por %p82, %p83
      %p85 = scmp.ne.s32.totalorder %s76, %s77
      %p86 = scmp.eq.s32.totalorder %s22, 0
      %p87 = por %p85, %p86
      %p88 = scmp.ne.s32.totalorder %s76, %s77
      %p89 = scmp.eq.s32.totalorder %s23, 7
      %p90 = por %p88, %p89
      %p92 = scmp.ne.s32.totalorder %s77, %s91
      %p93 = scmp.eq.s32.totalorder %s23, 0
      %p94 = por %p92, %p93
      %s96 = sadd.s32 %s95, 1
      %p99 = scmp.eq.s32.totalorder %s17, 7
      %p100 = scmp.ne.s32.totalorder %s95, %s97
      %p101 = scmp.eq.s32.totalorder %s17, 0
      %p102 = por %p100, %p101
      %p103 = scmp.ne.s32.totalorder %s95, %s97
      %p104 = scmp.eq.s32.totalorder %s22, 7
      %p105 = por %p103, %p104
      %p106 = scmp.ne.s32.totalorder %s97, %s98
      %p107 = scmp.eq.s32.totalorder %s22, 0
      %p108 = por %p106, %p107
      %p109 = scmp.ne.s32.totalorder %s97, %s98
      %p110 = scmp.eq.s32.totalorder %s23, 7
      %p111 = por %p109, %p110
      %p113 = scmp.ne.s32.totalorder %s98, %s112
      %p114 = scmp.eq.s32.totalorder %s23, 0
      %p115 = por %p113, %p114
      %s117 = sadd.s32 %s116, 1
      %p120 = scmp.eq.s32.totalorder %s17, 7
      %p121 = scmp.ne.s32.totalorder %s116, %s118
      %p122 = scmp.eq.s32.totalorder %s17, 0
      %p123 = por %p121, %p122
      %p124 = scmp.ne.s32.totalorder %s116, %s118
      %p125 = scmp.eq.s32.totalorder %s22, 7
      %p126 = por %p124, %p125
      %p127 = scmp.ne.s32.totalorder %s118, %s119
      %p128 = scmp.eq.s32.totalorder %s22, 0
      %p129 = por %p127, %p128
      %p130 = scmp.ne.s32.totalorder %s118, %s119
      %p131 = scmp.eq.s32.totalorder %s23, 7
      %p132 = por %p130, %p131
      %p134 = scmp.ne.s32.totalorder %s119, %s133
      %p135 = scmp.eq.s32.totalorder %s23, 0
      %p136 = por %p134, %p135
      %s137 = ssub.s32 %s24, %s43
      %s138 = ssub.s32 %s25, %s39
      %s139 = sor.u32 %s137, %s138
      %s140 = ssub.s32 %s26, %s35
      %s141 = sor.u32 %s139, %s140
      %p142 = scmp.eq.s32.totalorder %s141, 0
      %s144 = sadd.s32 %s143, 1
      %s145 = scalar_select %p142, %s143, %s144
      %p148 = pneg %p142
      %p149 = scmp.eq.s32.totalorder %s17, 7
      %p150 = por %p148, %p149
      %p151 = scmp.ne.s32.totalorder %s143, %s146
      %p152 = scmp.eq.s32.totalorder %s17, 0
      %p153 = por %p151, %p152
      %p154 = scmp.ne.s32.totalorder %s143, %s146
      %p155 = scmp.eq.s32.totalorder %s22, 7
      %p156 = por %p154, %p155
      %p157 = scmp.ne.s32.totalorder %s146, %s147
      %p158 = scmp.eq.s32.totalorder %s22, 0
      %p159 = por %p157, %p158
      %p160 = scmp.ne.s32.totalorder %s146, %s147
      %p161 = scmp.eq.s32.totalorder %s23, 7
      %p162 = por %p160, %p161
      %p164 = scmp.ne.s32.totalorder %s147, %s163
      %p165 = scmp.eq.s32.totalorder %s23, 0
      %p166 = por %p164, %p165
      %p167 = scmp.le.s32.totalorder 1, %s17
      %p168 = scmp.lt.s32.totalorder %s17, 9
      %p169 = pnand %p167, %p168
      %p170 = pneg %p169
      // Predicated region
      $region9: #{tpu_custom_call.1} parent=5 // pred_check
        _
      $region10: #{tpu_custom_call.1} parent=5 // pred_check_branch
        %172 = sbr.rel (%p169) target = $region12
      $region11: #{tpu_custom_call.1} parent=5 // pred_region
        %s173 = ssub.s32 %s17, 1
        // Predicated region
        $region13: #{tpu_custom_call.1} parent=11 // pred_check
          %p174 = pneg %p87
        $region14: #{tpu_custom_call.1} parent=11 // pred_check_branch
          %176 = sbr.rel (%p174) target = $region16
        $region15: #{tpu_custom_call.1} parent=11 // pred_region
          _
        $region16: #{tpu_custom_call.1} parent=11 // pred_fallthru
          _
        // Predicated region
        $region17: #{tpu_custom_call.1} parent=11 // pred_check
          %p177 = pneg %p108
        $region18: #{tpu_custom_call.1} parent=11 // pred_check_branch
          %179 = sbr.rel (%p177) target = $region20
        $region19: #{tpu_custom_call.1} parent=11 // pred_region
          _
        $region20: #{tpu_custom_call.1} parent=11 // pred_fallthru
          _
        // Predicated region
        $region21: #{tpu_custom_call.1} parent=11 // pred_check
          %p180 = pneg %p129
        $region22: #{tpu_custom_call.1} parent=11 // pred_check_branch
          %182 = sbr.rel (%p180) target = $region24
        $region23: #{tpu_custom_call.1} parent=11 // pred_region
          _
        $region24: #{tpu_custom_call.1} parent=11 // pred_fallthru
          _
      $region12: #{tpu_custom_call.1} parent=5 // pred_fallthru
        _
      %p183 = scmp.lt.s32.totalorder %s17, 8
      // Predicated region
      $region25: #{tpu_custom_call.1} parent=5 // pred_check
        %p184 = pneg %p183
      $region26: #{tpu_custom_call.1} parent=5 // pred_check_branch
        %186 = sbr.rel (%p184) target = $region28
      $region27: #{tpu_custom_call.1} parent=5 // pred_region
        // Predicated region
        $region29: #{tpu_custom_call.1} parent=27 // pred_check
          %p187 = pneg %p60
        $region30: #{tpu_custom_call.1} parent=27 // pred_check_branch
          %189 = sbr.rel (%p187) target = $region32
        $region31: #{tpu_custom_call.1} parent=27 // pred_region
          %s190 = sand.u32 %s50, 1
          %s191 = scalar_lea.sflag [#allocation4], %s190
          %s192 = sand.u32 %s50, 1
          %s193 = smul.addr %s192, 32
          %s194 = scalar_lea.vmem [#allocation3], %s193
          %s195 = smul.u32 4, %s25
          %s196 = smul.u32 2, %s26
          %s198 = ssub.s32 512, 512
          %199 = vsyncadd %s191, %s198
          %s200 = smul.addr %s195, 2
          %s201 = sadd.s32 %s196, %s200
          %s202 = smul.addr %s24, 32
          %s203 = sadd.s32 %s201, %s202
          %s204 = smul.addr %s203, 64
          %s205 = scalar_lea.hbm %s0, %s204
          %s206 = sshll.u32 %s194, 4
          %s207 = int_to_ptr.vmem [resolvable:$true] %s206
          %212 = dma.hbm_to_vmem [thread:$0]  %s205, 512, %s207, %s191, 64, 64, 4
        $region32: #{tpu_custom_call.1} parent=27 // pred_fallthru
          _
      $region28: #{tpu_custom_call.1} parent=5 // pred_fallthru
        _
      %p213 = scmp.le.s32.totalorder 1, %s17
      %p214 = scmp.lt.s32.totalorder %s17, 9
      %p215 = pnand %p213, %p214
      %p216 = pneg %p215
      // Predicated region
      $region33: #{tpu_custom_call.1} parent=5 // pred_check
        _
      $region34: #{tpu_custom_call.1} parent=5 // pred_check_branch
        %218 = sbr.rel (%p215) target = $region36
      $region35: #{tpu_custom_call.1} parent=5 // pred_region
        %s219 = ssub.s32 %s17, 1
        %s220 = sand.u32 %s53, 1
        %s221 = scalar_lea.sflag [#allocation4], %s220
        %s222 = sand.u32 %s53, 1
        %s223 = smul.addr %s222, 32
        %s224 = scalar_lea.vmem [#allocation3], %s223
        // Predicated region
        $region37: #{tpu_custom_call.1} parent=35 // pred_check
          %p225 = pneg %p66
        $region38: #{tpu_custom_call.1} parent=35 // pred_check_branch
          %227 = sbr.rel (%p225) target = $region40
        $region39: #{tpu_custom_call.1} parent=35 // pred_region
          %228 = dma.done %s221, 512
        $region40: #{tpu_custom_call.1} parent=35 // pred_fallthru
          _
        %s229 = sand.u32 %s53, 1
        %s230 = scalar_lea.sflag [#allocation4], %s229
        %s231 = sand.u32 %s53, 1
        %s232 = smul.addr %s231, 32
        %s233 = scalar_lea.vmem [#allocation3], %s232
        %p234 = pneg %p66
        %p235 = pneg %p63
        %p236 = pneg %p87
        %p237 = pneg %p84
        %p238 = pneg %p108
        %p239 = pneg %p105
        %p240 = pneg %p129
        %p241 = pneg %p126
        %p242 = pneg %p159
        %p243 = pneg %p156
        %s244 = sand.u32 %s146, 1
        %s245 = scalar_lea.sflag [#allocation5], %s244
        %s246 = sand.u32 %s146, 1
        %s247 = smul.addr %s246, 32
        %s248 = scalar_lea.vmem [#allocation6], %s247
        %s249 = smul.u32 4, %s28
        %s250 = smul.u32 2, %s29
        %s251 = smul.u32 4, %s28
        %s252 = smul.u32 2, %s29
        %v254 = vld [vmem:[%s224] sm:$0xf]
        %v255 = vld [vmem:[%s224 + $0x4] sm:$0xf]
        %v256 = vld [vmem:[%s224 + $0x8] sm:$0xf]
        %v257 = vld [vmem:[%s224 + $0xc] sm:$0xf]
        %v258 = vld [vmem:[%s224 + $0x10] sm:$0xf]
        %v259 = vld [vmem:[%s224 + $0x14] sm:$0xf]
        %v260 = vld [vmem:[%s224 + $0x18] sm:$0xf]
        %v261 = vld [vmem:[%s224 + $0x1c] sm:$0xf]
        %v262 = vld [vmem:[%s1] sm:$0xf]
        %v263 = vld [vmem:[%s1 + $0x4] sm:$0xf]
        %v264 = vld [vmem:[%s1 + $0x8] sm:$0xf]
        %v265 = vld [vmem:[%s1 + $0xc] sm:$0xf]
        %v266 = vld [vmem:[%s1 + $0x10] sm:$0x3]
        %v267 = vld [vmem:[%s2] sm:$0x1]
        %v269 = vlaneseq
        %v270 = vshrl.u32 %v269, 7
        %v271 = vsub.s32 0, %v270
        %v272 = vrot.slane %v267, %v271
        %v282 = vunpack.c.l.b16 %v254
        %v283 = vunpack.c.l.b16 %v255
        %v284 = vunpack.c.l.b16 %v256
        %v285 = vunpack.c.l.b16 %v257
        %v286 = vunpack.c.l.b16 %v258
        %v287 = vunpack.c.l.b16 %v259
        %v288 = vunpack.c.l.b16 %v260
        %v289 = vunpack.c.l.b16 %v261
        %v290 = vpack.c.b16 %v283, %v282
        %v291 = vpack.c.b16 %v285, %v284
        %v292 = vpack.c.b16 %v287, %v286
        %v293 = vpack.c.b16 %v289, %v288
        %v299 = vunpack.c.l.b16 %v262
        %v300 = vunpack.c.l.b16 %v263
        %v301 = vunpack.c.l.b16 %v264
        %v302 = vunpack.c.l.b16 %v265
        %v303 = vunpack.c.l.b16 %v266
        %v304 = vpack.c.b16 %v300, %v299
        %v305 = vpack.c.b16 %v302, %v301
        %v306 = vpack.c.b16 %v303, %v303
        %vm309 = vcmask 293888
        %v311 = vsel %vm309, %v290, 0
        %v314 = vsel %vm309, %v291, 0
        %v317 = vsel %vm309, %v292, 0
        %v320 = vsel %vm309, %v293, 0
        %vm322 = vcmask 1041408
        %v324 = vsel %vm322, %v306, 0
        %326 = vmatprep.subr.bf16.mxu0 0
        %327 = vmatpush1.bf16.msra.mxu0 0
        %328 = vmatprep.subr.bf16.mxu0 0
        %329 = vmatpush1.bf16.msra.mxu0 0
        %330 = vmatprep.subr.bf16.mxu0 0
        %331 = vmatpush1.bf16.msra.mxu0 0
        %332 = vmatprep.subr.bf16.mxu0 0
        %333 = vmatpush1.bf16.msra.mxu0 0
        %334 = vmatprep.subr.bf16.mxu0 0
        %335 = vmatpush1.bf16.msra.mxu0 0
        %336 = vmatprep.subr.bf16.mxu0 0
        %337 = vmatpush1.bf16.msra.mxu0 %v324
        %338 = vmatprep.subr.bf16.mxu0 0
        %339 = vmatpush1.bf16.msra.mxu0 %v305
        %340 = vmatprep.subr.bf16.mxu0 0
        %341 = vmatpush1.bf16.msra.mxu0 %v304
        %342 = vmatprep.subr.bf16.mxu0 0
        %343 = vmatpush2.bf16.msra.mxu0 0
        %344 = vmatprep.subr.bf16.mxu0 0
        %345 = vmatpush2.bf16.msra.mxu0 0
        %346 = vmatprep.subr.bf16.mxu0 0
        %347 = vmatpush2.bf16.msra.mxu0 0
        %348 = vmatprep.subr.bf16.mxu0 0
        %349 = vmatpush2.bf16.msra.mxu0 0
        %350 = vmatprep.subr.bf16.mxu0 0
        %351 = vmatpush2.bf16.msra.mxu0 0
        %352 = vmatprep.subr.bf16.mxu0 0
        %353 = vmatpush2.bf16.msra.mxu0 0
        %354 = vmatprep.subr.bf16.mxu0 0
        %355 = vmatpush2.bf16.msra.mxu0 0
        %356 = vmatprep.subr.bf16.mxu0 0
        %357 = vmatpush2.bf16.msra.mxu0 0
        %358 = vmatprep.mubr.bf16.mxu0 0
        %359 = vmatmul.mubr.bf16.gmra.mxu0 %v311
        %v360 = vpop.f32.mrf.mxu0
        %v361 = vadd.f32 %v272, %v360
        %v362 = vpop.f32.mrf.mxu0
        %v363 = vpop.f32.mrf.mxu0
        %v364 = vadd.f32 %v272, %v363
        %v365 = vpop.f32.mrf.mxu0
        %366 = vmatprep.mubr.bf16.mxu0 0
        %367 = vmatmul.mubr.bf16.gmra.mxu0 %v314
        %v368 = vpop.f32.mrf.mxu0
        %v369 = vadd.f32 %v272, %v368
        %v370 = vpop.f32.mrf.mxu0
        %v371 = vpop.f32.mrf.mxu0
        %v372 = vadd.f32 %v272, %v371
        %v373 = vpop.f32.mrf.mxu0
        %374 = vmatprep.mubr.bf16.mxu0 0
        %375 = vmatmul.mubr.bf16.gmra.mxu0 %v317
        %v376 = vpop.f32.mrf.mxu0
        %v377 = vadd.f32 %v272, %v376
        %v378 = vpop.f32.mrf.mxu0
        %v379 = vpop.f32.mrf.mxu0
        %v380 = vadd.f32 %v272, %v379
        %v381 = vpop.f32.mrf.mxu0
        %382 = vmatprep.mubr.bf16.mxu0 0
        %383 = vmatmul.mubr.bf16.gmra.mxu0 %v320
        %v384 = vpop.f32.mrf.mxu0
        %v385 = vadd.f32 %v272, %v384
        %v386 = vpop.f32.mrf.mxu0
        %v387 = vpop.f32.mrf.mxu0
        %v388 = vadd.f32 %v272, %v387
        %v389 = vpop.f32.mrf.mxu0
        %390 = vdwg.mxu0
        %s391 = sld [smem:[#allocation2]]
        %vm392 = vcmp.ge.f32.partialorder %v361, 0.0
        %vm393 = vcmp.ge.f32.partialorder %v364, 0.0
        %vm394 = vcmp.ge.f32.partialorder %v369, 0.0
        %vm395 = vcmp.ge.f32.partialorder %v372, 0.0
        %vm396 = vcmp.ge.f32.partialorder %v377, 0.0
        %vm397 = vcmp.ge.f32.partialorder %v380, 0.0
        %vm398 = vcmp.ge.f32.partialorder %v385, 0.0
        %vm399 = vcmp.ge.f32.partialorder %v388, 0.0
        %v400 = vstv %s391
        %v401 = vmul.f32 %v400, %v361
        %v402 = vmul.f32 %v400, %v364
        %v403 = vmul.f32 %v400, %v369
        %v404 = vmul.f32 %v400, %v372
        %v405 = vmul.f32 %v400, %v377
        %v406 = vmul.f32 %v400, %v380
        %v407 = vmul.f32 %v400, %v385
        %v408 = vmul.f32 %v400, %v388
        %v409 = vsel %vm392, %v361, %v401
        %v410 = vsel %vm393, %v364, %v402
        %v411 = vsel %vm394, %v369, %v403
        %v412 = vsel %vm395, %v372, %v404
        %v413 = vsel %vm396, %v377, %v405
        %v414 = vsel %vm397, %v380, %v406
        %v415 = vsel %vm398, %v385, %v407
        %v416 = vsel %vm399, %v388, %v408
        %v417 = vpack.c.bf16 %v410, %v409
        %v418 = vpack.c.bf16 %v412, %v411
        %v419 = vpack.c.bf16 %v414, %v413
        %v420 = vpack.c.bf16 %v416, %v415
        %v425 = vunpack.c.l.b16 %v417
        %v426 = vunpack.c.h.b16 %v417
        %v427 = vunpack.c.l.b16 %v418
        %v428 = vunpack.c.h.b16 %v418
        %v429 = vunpack.c.l.b16 %v419
        %v430 = vunpack.c.h.b16 %v419
        %v431 = vunpack.c.l.b16 %v420
        %v432 = vunpack.c.h.b16 %v420
        %v433 = vpack.c.b16 %v425, %v425
        %v434 = vpack.c.b16 %v426, %v426
        %v435 = vpack.c.b16 %v427, %v427
        %v436 = vpack.c.b16 %v428, %v428
        %v437 = vpack.c.b16 %v429, %v429
        %v438 = vpack.c.b16 %v430, %v430
        %v439 = vpack.c.b16 %v431, %v431
        %v440 = vpack.c.b16 %v432, %v432
        %vm449 = vcmask 125952
        %450 = vst.msk [vmem:[%s248] sm:$0xf] %vm449, %v433
        %451 = vst.msk [vmem:[%s248 + $0x4] sm:$0xf] %vm449, %v434
        %452 = vst.msk [vmem:[%s248 + $0x8] sm:$0xf] %vm449, %v435
        %453 = vst.msk [vmem:[%s248 + $0xc] sm:$0xf] %vm449, %v436
        %454 = vst.msk [vmem:[%s248 + $0x10] sm:$0xf] %vm449, %v437
        %455 = vst.msk [vmem:[%s248 + $0x14] sm:$0xf] %vm449, %v438
        %456 = vst.msk [vmem:[%s248 + $0x18] sm:$0xf] %vm449, %v439
        %457 = vst.msk [vmem:[%s248 + $0x1c] sm:$0xf] %vm449, %v440
        %s458 = sand.u32 %s146, 1
        %s459 = scalar_lea.sflag [#allocation5], %s458
        %s460 = sand.u32 %s146, 1
        %s461 = smul.addr %s460, 32
        %s462 = scalar_lea.vmem [#allocation6], %s461
        // Predicated region
        $region41: #{tpu_custom_call.1} parent=35 // pred_check
          %p463 = pneg %p156
        $region42: #{tpu_custom_call.1} parent=35 // pred_check_branch
          %465 = sbr.rel (%p463) target = $region44
        $region43: #{tpu_custom_call.1} parent=35 // pred_region
          %s466 = smul.u32 4, %s28
          %s467 = smul.u32 2, %s29
          %s469 = ssub.s32 512, 512
          %470 = vsyncadd %s459, %s469
          %s471 = smul.addr %s466, 2
          %s472 = sadd.s32 %s467, %s471
          %s473 = smul.addr %s27, 32
          %s474 = sadd.s32 %s472, %s473
          %s475 = smul.addr %s474, 64
          %s476 = scalar_lea.hbm %s4, %s475
          %s477 = sshll.u32 %s462, 4
          %s478 = int_to_ptr.vmem [resolvable:$true] %s477
          %483 = dma.vmem_to_hbm [thread:$0]  %s478, 512, %s476, %s459, 64, 64, 4
        $region44: #{tpu_custom_call.1} parent=35 // pred_fallthru
          _
      $region36: #{tpu_custom_call.1} parent=5 // pred_fallthru
        _
      %p484 = scmp.le.s32.totalorder 2, %s17
      // Predicated region
      $region45: #{tpu_custom_call.1} parent=5 // pred_check
        %p485 = pneg %p484
      $region46: #{tpu_custom_call.1} parent=5 // pred_check_branch
        %487 = sbr.rel (%p485) target = $region48
      $region47: #{tpu_custom_call.1} parent=5 // pred_region
        %s488 = ssub.s32 %s17, 2
        // Predicated region
        $region49: #{tpu_custom_call.1} parent=47 // pred_check
          %p489 = pneg %p162
        $region50: #{tpu_custom_call.1} parent=47 // pred_check_branch
          %491 = sbr.rel (%p489) target = $region52
        $region51: #{tpu_custom_call.1} parent=47 // pred_region
          %s492 = sand.u32 %s147, 1
          %s493 = scalar_lea.sflag [#allocation5], %s492
          %s494 = sand.u32 %s147, 1
          %s495 = smul.addr %s494, 32
          %s496 = scalar_lea.vmem [#allocation6], %s495
          %497 = dma.done %s493, 512
        $region52: #{tpu_custom_call.1} parent=47 // pred_fallthru
          _
      $region48: #{tpu_custom_call.1} parent=5 // pred_fallthru
        _
    $region6: #{tpu_custom_call.1} parent=1 // loop_footer
      %s21 = sadd.s32 1, %s17
    $region7: #{tpu_custom_call.1} parent=1 // loop_footer_branch
      %16 = sbr.rel target = $region3
    $region8: #{tpu_custom_call.1} parent=1 // loop_exit
      _
    %498 = vsyncpa [#allocation4], 1
    %s499 = scalar_lea.sflag [#allocation4], 1
    %500 = vsyncpa %s499, 1
    %501 = vsyncpa [#allocation5], 1
    %s502 = scalar_lea.sflag [#allocation5], 1
    %503 = vsyncpa %s502, 1

</llo_original>
